<compile_context>
chip_gen: v7x
topology: tpu7x:2x2x1
jax: 0.10.0
libtpu: 0.0.40
codegen_flags: <defaults>
</compile_context>

<pallas_src>
import jax
import jax.numpy as jnp
from jax.experimental import pallas as pl
from jax.experimental.pallas import tpu as pltpu


def _weighted_sum_kernel(alpha_ref, f1_ref, f2_ref, o_ref):
    # alpha_ref: SMEM scalar (shape (1,)); f1/f2/o: VMEM tiles [rows, lanes].
    a = alpha_ref[0]                                  # f32 scalar
    f1 = f1_ref[...].astype(jnp.float32)
    f2 = f2_ref[...].astype(jnp.float32)
    o_ref[...] = (a * f1 + (1.0 - a) * f2).astype(o_ref.dtype)


_LANE_CANDIDATES = (4096, 2048, 1024, 512, 256, 128)
_TINY_BYTES = 512 * 1024                 # below this: one block, one grid step
_TARGET_BLOCK_BYTES = 4 * 1024 * 1024    # ~4 MiB per-input block
_MIN_GRID_STEPS = 4                      # pipeline overlap + v7x 2-TC sharding


def _choose_tiling(n, itemsize):
    """Return (lane, row_tile, rows_total) or None if n is lane-ragged."""
    lane = None
    for cand in _LANE_CANDIDATES:
        if n % cand == 0:
            lane = cand
            break
    if lane is None:
        return None                      # caller uses the full-extent fallback

    rows_total = n // lane
    total_bytes = n * itemsize
    if total_bytes <= _TINY_BYTES:
        # Truly tiny input: single whole-array block (full-extent => always a
        # legal block shape, one grid step, no masked stores).
        return lane, rows_total, rows_total

    bytes_per_row = lane * itemsize
    target_rows = max(8, _TARGET_BLOCK_BYTES // bytes_per_row)
    rows_for_min_steps = -(-rows_total // _MIN_GRID_STEPS)   # ceil
    row_tile = min(target_rows, rows_for_min_steps)
    row_tile = max(8, (row_tile // 8) * 8)                   # sublane-dense
    return lane, row_tile, rows_total


def weighted_sum_fusion(feat1, feat2, alpha):
    """alpha * feat1 + (1 - alpha) * feat2 via a Pallas TPU kernel.

    feat1, feat2: arrays of matching shape/dtype (e.g. [B, 2048] float32)
    alpha:        scalar / [1] learnable parameter
    """
    assert feat1.shape == feat2.shape, "feature shapes must match"
    assert feat1.dtype == feat2.dtype, "feature dtypes must match"
    orig_shape = feat1.shape
    dtype = feat1.dtype
    itemsize = jnp.dtype(dtype).itemsize

    n = 1
    for s in orig_shape:
        n *= s

    alpha = jnp.asarray(alpha, dtype=jnp.float32).reshape((1,))

    tiling = _choose_tiling(n, itemsize)
    if tiling is None:
        # Element count not a multiple of 128: single full-extent block
        # (no padding copies).  Fine for the small feature vectors this
        # module sees.
        # TODO(synk): for very large lane-ragged inputs, tile with an
        # in-kernel masked tail block instead of one whole-array block.
        lane, row_tile, rows_total = n, 1, 1
    else:
        lane, row_tile, rows_total = tiling

    # Contiguous reshape: pure metadata in XLA, no extra HBM traffic.
    f1 = feat1.reshape(rows_total, lane)
    f2 = feat2.reshape(rows_total, lane)

    grid = (pl.cdiv(rows_total, row_tile),)
    feat_spec = pl.BlockSpec((row_tile, lane), lambda i: (i, 0))

    out_slab = pl.pallas_call(
        _weighted_sum_kernel,
        out_shape=jax.ShapeDtypeStruct((rows_total, lane), dtype),
        grid=grid,
        in_specs=[
            pl.BlockSpec(memory_space=pltpu.SMEM),  # alpha scalar
            feat_spec,                              # feat1 slab
            feat_spec,                              # feat2 slab
        ],
        out_specs=feat_spec,
        compiler_params=pltpu.CompilerParams(
            dimension_semantics=("parallel",),
            # 3 arrays x 2 buffers x <=4 MiB blocks = <=24 MiB footprint;
            # 48 MiB scoped limit leaves headroom on v7x's 64 MiB physical
            # VMEM and is trivially safe on v5e/v6e (128 MiB).
            vmem_limit_bytes=48 * 1024 * 1024,
        ),
    )(alpha, f1, f2)

    return out_slab.reshape(orig_shape)


if __name__ == "__main__":
    key = jax.random.PRNGKey(0)
    k1, k2 = jax.random.split(key)

    # Shapes consistent with the module: batch=2, feature_dim=2048
    B, D = 2, 2048
    feat1 = jax.random.normal(k1, (B, D), dtype=jnp.float32)
    feat2 = jax.random.normal(k2, (B, D), dtype=jnp.float32)

    # nn.Parameter(torch.ones(1) * 0.5)
    alpha = jnp.ones((1,), dtype=jnp.float32) * 0.5

    out = weighted_sum_fusion(feat1, feat2, alpha)
    out = jax.block_until_ready(out)

    # Reference check (plain JAX)
    ref = alpha * feat1 + (1.0 - alpha) * feat2
    assert out.shape == (B, D)
    assert jnp.allclose(out, ref, atol=1e-6), "mismatch vs reference"

    print("KERNEL_OK")
</pallas_src>

<mosaic_0001>
module attributes {stable_mosaic.version = 11 : i64} {
  func.func @_weighted_sum_kernel(%arg0: i32, %arg1: memref<1xf32, #tpu.memory_space<smem>>, %arg2: memref<1x4096xf32, #tpu.memory_space<vmem>>, %arg3: memref<1x4096xf32, #tpu.memory_space<vmem>>, %arg4: memref<1x4096xf32, #tpu.memory_space<vmem>>) attributes {dimension_semantics = [#tpu.dimension_semantics<parallel>], iteration_bounds = array<i64: 1>, scalar_prefetch = 0 : i64, scratch_operands = 0 : i64, tpu.core_type = #tpu.core_type<tc>, window_params = [{transform_indices = @transform_0, window_bounds = array<i64: 1>}, {transform_indices = @transform_1, window_bounds = array<i64: 1, 4096>}, {transform_indices = @transform_2, window_bounds = array<i64: 1, 4096>}, {transform_indices = @transform_3, window_bounds = array<i64: 1, 4096>}]} {
    %c0 = arith.constant 0 : index
    %0 = memref.load %arg1[%c0] : memref<1xf32, #tpu.memory_space<smem>>
    %c0_0 = arith.constant 0 : index
    %c0_1 = arith.constant 0 : index
    %1 = vector.load %arg2[%c0_0, %c0_1] : memref<1x4096xf32, #tpu.memory_space<vmem>>, vector<1x4096xf32>
    %c0_2 = arith.constant 0 : index
    %c0_3 = arith.constant 0 : index
    %2 = vector.load %arg3[%c0_2, %c0_3] : memref<1x4096xf32, #tpu.memory_space<vmem>>, vector<1x4096xf32>
    %3 = vector.broadcast %0 : f32 to vector<1x4096xf32>
    %4 = arith.mulf %3, %1 : vector<1x4096xf32>
    %cst = arith.constant 1.000000e+00 : f32
    %5 = arith.subf %cst, %0 : f32
    %6 = vector.broadcast %5 : f32 to vector<1x4096xf32>
    %7 = arith.mulf %6, %2 : vector<1x4096xf32>
    %8 = arith.addf %4, %7 : vector<1x4096xf32>
    %c0_4 = arith.constant 0 : index
    %c0_5 = arith.constant 0 : index
    %9 = vector.load %arg4[%c0_4, %c0_5] : memref<1x4096xf32, #tpu.memory_space<vmem>>, vector<1x4096xf32>
    tpu.vector_store %arg4[%c0_4, %c0_5], %8 {strides = array<i32>} : memref<1x4096xf32, #tpu.memory_space<vmem>>, vector<1x4096xf32>,
    return
  }
  func.func @transform_0(%arg0: i32) -> i32 {
    %c0_i32 = arith.constant 0 : i32
    %c0_i32_0 = arith.constant 0 : i32
    return %c0_i32 : i32
  }
  func.func @transform_1(%arg0: i32) -> (i32, i32) {
    %c0_i32 = arith.constant 0 : i32
    %c0_i32_0 = arith.constant 0 : i32
    return %arg0, %c0_i32 : i32, i32
  }
  func.func @transform_2(%arg0: i32) -> (i32, i32) {
    %c0_i32 = arith.constant 0 : i32
    %c0_i32_0 = arith.constant 0 : i32
    return %arg0, %c0_i32 : i32, i32
  }
  func.func @transform_3(%arg0: i32) -> (i32, i32) {
    %c0_i32 = arith.constant 0 : i32
    %c0_i32_0 = arith.constant 0 : i32
    return %arg0, %c0_i32 : i32, i32
  }
}

</mosaic_0001>

<llo_original>
// kernel: tpu_custom_call.1
$region0: #{tpu_custom_call.1}
  #allocation0 [shape = 'u32[]', space=smem, size = 0x4, offset = 0x4, fixed_abs, tag = 'smem constant byte address 0x4 - core index']
  #allocation1 [shape = 'u32[144,128]{1,0:T(1,128)}', space=vmem, size = 0x12000, scoped, tag = 'internal scratch']
  #allocation2 [shape = 'f32[1]{0:T(128)S(6)}', space=smem, size = 0x200, scoped, tag = 'scoped memory for tpu_custom_call.1']
  %s0 = inlined_call_operand.<no memory space> [shape: f32[1], index: 0, kind: input, shape index: {}]
  %s1 = inlined_call_operand.hbm [shape: f32[1,4096], index: 1, kind: input, shape index: {}]
  %s2 = inlined_call_operand.hbm [shape: f32[1,4096], index: 2, kind: input, shape index: {}]
  %s3 = inlined_call_operand.hbm [shape: f32[1,4096], index: 3, kind: output, shape index: {}]
  %s4 = sld [smem:[#allocation0]]
  $region30: #{tpu_custom_call.1} parent=0
    _
  %s6 = ssub.s32 1, %s4
  %s7 = scalar_select 0, %s6, %s4
  %8 = sst [smem:[#allocation2]] %s0
  $region1: #{tpu_custom_call.1} parent=0
    #allocation3 [shape = 'u8[16384]{0}', space=vmem, size = 0x4000, scoped, tag = 'input window, operand 1, single buffered']
    #allocation4 [shape = 's32[1]{0}', space=sflag, size = 0x4, scoped, tag = 'scoped memory for tpu_custom_call.1']
    #allocation5 [shape = 's32[1]{0}', space=sflag, size = 0x4, scoped, tag = 'scoped memory for tpu_custom_call.1']
    #allocation6 [shape = 'u8[16384]{0}', space=vmem, size = 0x4000, scoped, tag = 'input window, operand 2, single buffered']
    #allocation7 [shape = 's32[1]{0}', space=sflag, size = 0x4, scoped, tag = 'scoped memory for tpu_custom_call.1']
    #allocation8 [shape = 'u8[16384]{0}', space=vmem, size = 0x4000, scoped, tag = 'output window, operand 0, single buffered']
    %9 = vsyncpa [#allocation4], 0
    %10 = vsyncpa [#allocation7], 0
    %11 = vsyncpa [#allocation5], 0
    // Predicated region
    $region2: #{tpu_custom_call.1} parent=1 // pred_check
      _
    $region3: #{tpu_custom_call.1} parent=1 // pred_check_branch
      %13 = sbr.rel (0) target = $region5
    $region4: #{tpu_custom_call.1} parent=1 // pred_region
      _
    $region5: #{tpu_custom_call.1} parent=1 // pred_fallthru
      _
    // Predicated region
    $region6: #{tpu_custom_call.1} parent=1 // pred_check
      _
    $region7: #{tpu_custom_call.1} parent=1 // pred_check_branch
      %15 = sbr.rel (0) target = $region9
    $region8: #{tpu_custom_call.1} parent=1 // pred_region
      %s17 = ssub.s32 512, 512
      %18 = vsyncadd [#allocation4], %s17
      %s20 = sshll.u32 [#allocation3], 4
      %s21 = int_to_ptr.vmem [resolvable:$true] %s20
      %23 = dma.hbm_to_vmem [thread:$0]  %s1, 512, %s21, [#allocation4]
    $region9: #{tpu_custom_call.1} parent=1 // pred_fallthru
      _
    // Predicated region
    $region10: #{tpu_custom_call.1} parent=1 // pred_check
      _
    $region11: #{tpu_custom_call.1} parent=1 // pred_check_branch
      %25 = sbr.rel (0) target = $region13
    $region12: #{tpu_custom_call.1} parent=1 // pred_region
      %s27 = ssub.s32 512, 512
      %28 = vsyncadd [#allocation7], %s27
      %s30 = sshll.u32 [#allocation6], 4
      %s31 = int_to_ptr.vmem [resolvable:$true] %s30
      %33 = dma.hbm_to_vmem [thread:$0]  %s2, 512, %s31, [#allocation7]
    $region13: #{tpu_custom_call.1} parent=1 // pred_fallthru
      _
    // Predicated region
    $region14: #{tpu_custom_call.1} parent=1 // pred_check
      _
    $region15: #{tpu_custom_call.1} parent=1 // pred_check_branch
      %35 = sbr.rel (0) target = $region17
    $region16: #{tpu_custom_call.1} parent=1 // pred_region
      %36 = dma.done [#allocation4], 512
    $region17: #{tpu_custom_call.1} parent=1 // pred_fallthru
      _
    // Predicated region
    $region18: #{tpu_custom_call.1} parent=1 // pred_check
      _
    $region19: #{tpu_custom_call.1} parent=1 // pred_check_branch
      %38 = sbr.rel (0) target = $region21
    $region20: #{tpu_custom_call.1} parent=1 // pred_region
      %39 = dma.done [#allocation7], 512
    $region21: #{tpu_custom_call.1} parent=1 // pred_fallthru
      _
    %s40 = sld [smem:[#allocation2]]
    %v41 = vld [vmem:[#allocation3] sm:$0xff]
    %v42 = vld [vmem:[#allocation3 + $0x8] sm:$0xff]
    %v43 = vld [vmem:[#allocation3 + $0x10] sm:$0xff]
    %v44 = vld [vmem:[#allocation3 + $0x18] sm:$0xff]
    %v45 = vld [vmem:[#allocation6] sm:$0xff]
    %v46 = vld [vmem:[#allocation6 + $0x8] sm:$0xff]
    %v47 = vld [vmem:[#allocation6 + $0x10] sm:$0xff]
    %v48 = vld [vmem:[#allocation6 + $0x18] sm:$0xff]
    %v49 = vstv %s40
    %v50 = vmul.f32 %v49, %v41
    %v51 = vmul.f32 %v49, %v42
    %v52 = vmul.f32 %v49, %v43
    %v53 = vmul.f32 %v49, %v44
    %s54 = ssub.f32 1.0, %s40
    %v55 = vstv %s54
    %v56 = vmul.f32 %v55, %v45
    %v57 = vmul.f32 %v55, %v46
    %v58 = vmul.f32 %v55, %v47
    %v59 = vmul.f32 %v55, %v48
    %v60 = vadd.f32 %v50, %v56
    %v61 = vadd.f32 %v51, %v57
    %v62 = vadd.f32 %v52, %v58
    %v63 = vadd.f32 %v53, %v59
    %64 = vst [vmem:[#allocation8] sm:$0xff] %v60
    %65 = vst [vmem:[#allocation8 + $0x8] sm:$0xff] %v61
    %66 = vst [vmem:[#allocation8 + $0x10] sm:$0xff] %v62
    %67 = vst [vmem:[#allocation8 + $0x18] sm:$0xff] %v63
    // Predicated region
    $region22: #{tpu_custom_call.1} parent=1 // pred_check
      _
    $region23: #{tpu_custom_call.1} parent=1 // pred_check_branch
      %69 = sbr.rel (0) target = $region25
    $region24: #{tpu_custom_call.1} parent=1 // pred_region
      %s71 = ssub.s32 512, 512
      %72 = vsyncadd [#allocation5], %s71
      %s74 = sshll.u32 [#allocation8], 4
      %s75 = int_to_ptr.vmem [resolvable:$true] %s74
      %77 = dma.vmem_to_hbm [thread:$0]  %s75, 512, %s3, [#allocation5]
    $region25: #{tpu_custom_call.1} parent=1 // pred_fallthru
      _
    // Predicated region
    $region26: #{tpu_custom_call.1} parent=1 // pred_check
      _
    $region27: #{tpu_custom_call.1} parent=1 // pred_check_branch
      %79 = sbr.rel (0) target = $region29
    $region28: #{tpu_custom_call.1} parent=1 // pred_region
      %80 = dma.done [#allocation5], 512
    $region29: #{tpu_custom_call.1} parent=1 // pred_fallthru
      _
    %81 = vsyncpa [#allocation4], 1
    %82 = vsyncpa [#allocation7], 1
    %83 = vsyncpa [#allocation5], 1

</llo_original>
